<compile_context>
chip_gen: v6e
topology: v6e:2x2x1
jax: 0.10.0
libtpu: 0.0.40
codegen_flags: <defaults>
</compile_context>

<pallas_src>
import functools

import jax
import jax.numpy as jnp
from jax.experimental import pallas as pl
from jax.experimental.pallas import tpu as pltpu


H = 64    # fused hidden width: lanes 0:16 -> fc1, 16:32 -> zero pad, 32:64 -> fc3
N4 = 256  # fc4 / fc5 width


def _round_up(x, m):
    return (x + m - 1) // m * m


# ----------------------------------------------------------------------------
# Pallas kernel: full Critic forward for one batch tile.
# ----------------------------------------------------------------------------
def critic_kernel(x_ref, small_ref, big_ref, tail_ref, out_ref, *, n_in_pad):
    f32 = jnp.float32

    # ---- small slab (f32, 64 lanes; every sub-block starts on an 8-row line) ----
    wd = small_ref[0:n_in_pad, :]                          # (n_in_pad, 64) block-diag [2x-folded W1 | 0 | W3]
    w2p = small_ref[n_in_pad:n_in_pad + H, :]              # (64, 64)  W2 zero-padded (rows 0:16, lanes 0:32)
    bd = small_ref[n_in_pad + H:n_in_pad + H + 1, :]       # (1, 64)   [b1 | 0 | b3]
    b2r = small_ref[n_in_pad + H + 8:n_in_pad + H + 9, :]  # (1, 64)   [b2 | 0]

    # ---- big slab (fc4/fc5 MXU operands; f32 or bf16) ----
    wdt = big_ref.dtype
    w4a = big_ref[0:H, :]                                  # (64, 256) rows 0:32 = W4[:32], rest 0
    w4b = big_ref[H:2 * H, :]                              # (64, 256) rows 32:64 = W4[32:], rest 0
    w5 = big_ref[2 * H:2 * H + N4, :]                      # (256, 256)

    # ---- tail slab (f32 biases + fc6 weight row, 8-row aligned slots) ----
    b4 = tail_ref[0:1, :]                                  # (1, 256)
    b5 = tail_ref[8:9, :]                                  # (1, 256)
    w6r = tail_ref[16:17, :]                               # (1, 256)
    b6 = tail_ref[24:25, 0:1]                              # (1, 1)

    x = x_ref[...]                                         # (TB, n_in_pad) = [state, dyn, action, 0-pad]

    # fc1 (2x dyn folded into the weights) and fc3 fused as one block-diagonal
    # matmul; tanh applies elementwise (dead lanes 16:32 stay tanh(0)=0).
    z1 = jnp.tanh(jnp.dot(x, wd, preferred_element_type=f32) + bd)      # (TB, 64)
    # fc2 via zero-padded W2: no lane slicing of z1.
    h = jnp.tanh(jnp.dot(z1, w2p, preferred_element_type=f32) + b2r)    # (TB, 64)

    # fc4 on cat([fc2_out, fc3_out]) realised as two accumulating matmuls
    # (no VMEM scratch / masked partial stores on the critical chain).
    x4 = jnp.dot(h.astype(wdt), w4a, preferred_element_type=f32)
    x4 = x4 + jnp.dot(z1.astype(wdt), w4b, preferred_element_type=f32)
    x4 = jnp.maximum(x4 + b4, 0.0)                                      # (TB, 256)

    # fc5 + relu
    x5 = jnp.maximum(
        jnp.dot(x4.astype(wdt), w5, preferred_element_type=f32) + b5, 0.0)

    # fc6 (N=1): produce the result lane-dense as a (1, TB) row directly
    # (w6_row @ x5.T, same dot-with-transposed-RHS pattern as q @ k.T), so the
    # output store is an unmasked row instead of a masked (TB, 1) column.
    q = jnp.dot(w6r, x5.T, preferred_element_type=f32)                  # (1, TB)
    out_ref[...] = (q + b6).reshape(1, 1, -1).astype(out_ref.dtype)


# ----------------------------------------------------------------------------
# Parameter construction (PyTorch nn.Linear default init, W stored [in, out]).
# ----------------------------------------------------------------------------
def init_linear(key, fan_in, fan_out, dtype=jnp.float32):
    kw, kb = jax.random.split(key)
    bound = 1.0 / (fan_in ** 0.5)
    w = jax.random.uniform(kw, (fan_in, fan_out), dtype, minval=-bound, maxval=bound)
    b = jax.random.uniform(kb, (1, fan_out), dtype, minval=-bound, maxval=bound)
    return w, b


def make_critic_params(key, num_states, num_dynamics_states, num_actions):
    keys = jax.random.split(key, 6)
    w1, b1 = init_linear(keys[0], num_states + num_dynamics_states, 16)
    w2, b2 = init_linear(keys[1], 16, 32)
    w3, b3 = init_linear(keys[2], num_actions, 32)
    w4, b4 = init_linear(keys[3], 32 * 2, 256)
    w5, b5 = init_linear(keys[4], 256, 256)
    w6, b6 = init_linear(keys[5], 256, 1)
    return dict(w1=w1, b1=b1, w2=w2, b2=b2, w3=w3, b3=b3,
                w4=w4, b4=b4, w5=w5, b5=b5, w6=w6, b6=b6)


def pack_params(p, num_states, num_dynamics_states, num_actions, *, use_bf16=False):
    """Pack weights/biases into three slabs (small f32, big f32/bf16, tail f32)."""
    f32 = jnp.float32
    n_sd = num_states + num_dynamics_states
    n_in = n_sd + num_actions
    n_in_pad = _round_up(n_in, 8)

    # Fold the constant "2 * dynamics_states_real" into fc1's dynamics rows.
    w1 = p["w1"].astype(f32).at[num_states:n_sd, :].multiply(2.0)

    # Small slab (f32, 64 lanes): wd | padded W2 | bias rows, 8-row aligned.
    small = jnp.zeros((n_in_pad + 80, H), f32)
    small = small.at[0:n_sd, 0:16].set(w1)                                   # W1 (scaled)
    small = small.at[n_sd:n_in, 32:64].set(p["w3"].astype(f32))              # W3
    small = small.at[n_in_pad:n_in_pad + 16, 0:32].set(p["w2"].astype(f32))  # W2 (padded)
    small = small.at[n_in_pad + H, 0:16].set(p["b1"].reshape(-1).astype(f32))
    small = small.at[n_in_pad + H, 32:64].set(p["b3"].reshape(-1).astype(f32))
    small = small.at[n_in_pad + H + 8, 0:32].set(p["b2"].reshape(-1).astype(f32))

    # Big slab: fc4 halves (zero-padded to 64 rows each) + fc5, optionally bf16.
    big = jnp.zeros((2 * H + N4, N4), f32)
    big = big.at[0:32, :].set(p["w4"][0:32, :].astype(f32))             # w4a: fc2 half
    big = big.at[H + 32:2 * H, :].set(p["w4"][32:64, :].astype(f32))    # w4b: fc3 half
    big = big.at[2 * H:2 * H + N4, :].set(p["w5"].astype(f32))          # W5
    big = big.astype(jnp.bfloat16 if use_bf16 else f32)

    # Tail slab (f32): b4 / b5 / W6-row / b6, each on its own 8-row slot.
    tail = jnp.zeros((32, N4), f32)
    tail = tail.at[0, :].set(p["b4"].reshape(-1).astype(f32))
    tail = tail.at[8, :].set(p["b5"].reshape(-1).astype(f32))
    tail = tail.at[16, :].set(p["w6"].reshape(-1).astype(f32))
    tail = tail.at[24, 0].set(p["b6"].reshape(()).astype(f32))

    return dict(small=small, big=big, tail=tail, n_in_pad=n_in_pad)


# ----------------------------------------------------------------------------
# Wrapper: packs activations, pads batch, invokes the batch-tiled kernel.
# ----------------------------------------------------------------------------
def _pick_tile(B, batch_tile):
    if batch_tile is None:
        batch_tile = B if B <= 1024 else 1024   # cap TB; pad instead of TB=B blowups
    batch_tile = max(8, min(int(batch_tile), 2048))
    return _round_up(batch_tile, 8)


def critic_forward(state, dynamics_states_real, action, packed, *, batch_tile=None):
    small, big, tail = packed["small"], packed["big"], packed["tail"]
    n_in_pad = packed["n_in_pad"]

    B = state.shape[0]
    x = jnp.concatenate(
        [state, dynamics_states_real, action], axis=-1).astype(jnp.float32)
    n_in = x.shape[1]

    TB = _pick_tile(B, batch_tile)
    B_pad = _round_up(B, TB)
    x = jnp.pad(x, ((0, B_pad - B), (0, n_in_pad - n_in)))
    num_tiles = B_pad // TB

    flops = int(2 * B_pad * (n_in_pad * H + H * H + 2 * H * N4 + N4 * N4 + N4))
    transcendentals = int(B_pad * 2 * H)
    bytes_accessed = int(4 * x.size + 4 * B_pad
                         + small.size * small.dtype.itemsize
                         + big.size * big.dtype.itemsize
                         + tail.size * tail.dtype.itemsize)

    kernel = functools.partial(critic_kernel, n_in_pad=n_in_pad)
    out = pl.pallas_call(
        kernel,
        out_shape=jax.ShapeDtypeStruct((num_tiles, 1, TB), jnp.float32),
        grid=(num_tiles,),
        in_specs=[
            pl.BlockSpec((TB, n_in_pad), lambda i: (i, 0)),
            pl.BlockSpec(small.shape, lambda i: (0, 0)),   # weights stay VMEM-resident
            pl.BlockSpec(big.shape, lambda i: (0, 0)),
            pl.BlockSpec(tail.shape, lambda i: (0, 0)),
        ],
        out_specs=pl.BlockSpec((1, 1, TB), lambda i: (i, 0, 0)),  # lane-dense row per tile
        compiler_params=pltpu.CompilerParams(
            dimension_semantics=("parallel",)),
        cost_estimate=pl.CostEstimate(
            flops=flops, transcendentals=transcendentals,
            bytes_accessed=bytes_accessed),
    )(x, small, big, tail)

    return out.reshape(-1)[:B].reshape(B, 1)


# Pure-JAX reference (mirrors the PyTorch module) for correctness checking.
def critic_forward_ref(state, dyn, action, p):
    sa = jnp.concatenate([state, 2.0 * dyn], axis=-1)
    h = jnp.tanh(jnp.dot(sa, p["w1"]) + p["b1"])
    h = jnp.tanh(jnp.dot(h, p["w2"]) + p["b2"])
    a = jnp.tanh(jnp.dot(action, p["w3"]) + p["b3"])
    cat = jnp.concatenate([h, a], axis=-1)
    x = jax.nn.relu(jnp.dot(cat, p["w4"]) + p["b4"])
    x = jax.nn.relu(jnp.dot(x, p["w5"]) + p["b5"])
    return jnp.dot(x, p["w6"]) + p["b6"]


if __name__ == "__main__":
    num_states = 6
    num_dynamics_states = 4
    num_actions = 3
    batch = 8

    key = jax.random.PRNGKey(0)
    k_params, k_s, k_d, k_a = jax.random.split(key, 4)

    params = make_critic_params(k_params, num_states, num_dynamics_states, num_actions)
    state = jax.random.normal(k_s, (batch, num_states), jnp.float32)
    dyn = jax.random.normal(k_d, (batch, num_dynamics_states), jnp.float32)
    action = jax.random.normal(k_a, (batch, num_actions), jnp.float32)

    ref = critic_forward_ref(state, dyn, action, params)

    # f32 path (exact match expected).
    packed = pack_params(params, num_states, num_dynamics_states, num_actions)
    out = jax.block_until_ready(critic_forward(state, dyn, action, packed))
    assert out.shape == (batch, 1)
    assert jnp.allclose(out, ref, atol=1e-5, rtol=1e-5), (out, ref)

    # bf16 fc4/fc5 operands (MXU-native), f32 accumulation; looser tolerance.
    packed_bf16 = pack_params(params, num_states, num_dynamics_states,
                              num_actions, use_bf16=True)
    out_bf16 = jax.block_until_ready(critic_forward(state, dyn, action, packed_bf16))
    assert out_bf16.shape == (batch, 1)
    assert jnp.allclose(out_bf16, ref, atol=5e-2, rtol=5e-2), (out_bf16, ref)

    print("KERNEL_OK")
</pallas_src>

<mosaic_0001>
module attributes {stable_mosaic.version = 11 : i64} {
  func.func @critic_kernel(%arg0: i32, %arg1: memref<8x16xf32, #tpu.memory_space<vmem>>, %arg2: memref<96x64xf32, #tpu.memory_space<vmem>>, %arg3: memref<384x256xf32, #tpu.memory_space<vmem>>, %arg4: memref<32x256xf32, #tpu.memory_space<vmem>>, %arg5: memref<1x1x8xf32, #tpu.memory_space<vmem>>) attributes {dimension_semantics = [#tpu.dimension_semantics<parallel>], iteration_bounds = array<i64: 1>, scalar_prefetch = 0 : i64, scratch_operands = 0 : i64, tpu.core_type = #tpu.core_type<tc>, window_params = [{transform_indices = @transform_0, window_bounds = array<i64: 8, 16>}, {pipeline_mode = #tpu.pipeline_mode<synchronous>, transform_indices = @transform_1, window_bounds = array<i64: 96, 64>}, {pipeline_mode = #tpu.pipeline_mode<synchronous>, transform_indices = @transform_2, window_bounds = array<i64: 384, 256>}, {pipeline_mode = #tpu.pipeline_mode<synchronous>, transform_indices = @transform_3, window_bounds = array<i64: 32, 256>}, {transform_indices = @transform_4, window_bounds = array<i64: 1, 1, 8>}]} {
    %c0 = arith.constant 0 : index
    %c0_0 = arith.constant 0 : index
    %0 = vector.load %arg2[%c0, %c0_0] : memref<96x64xf32, #tpu.memory_space<vmem>>, vector<16x64xf32>
    %c16 = arith.constant 16 : index
    %c0_1 = arith.constant 0 : index
    %1 = vector.load %arg2[%c16, %c0_1] : memref<96x64xf32, #tpu.memory_space<vmem>>, vector<64x64xf32>
    %c80 = arith.constant 80 : index
    %c0_2 = arith.constant 0 : index
    %2 = vector.load %arg2[%c80, %c0_2] : memref<96x64xf32, #tpu.memory_space<vmem>>, vector<1x64xf32>
    %c88 = arith.constant 88 : index
    %c0_3 = arith.constant 0 : index
    %3 = vector.load %arg2[%c88, %c0_3] : memref<96x64xf32, #tpu.memory_space<vmem>>, vector<1x64xf32>
    %c0_4 = arith.constant 0 : index
    %c0_5 = arith.constant 0 : index
    %4 = vector.load %arg3[%c0_4, %c0_5] : memref<384x256xf32, #tpu.memory_space<vmem>>, vector<64x256xf32>
    %c64 = arith.constant 64 : index
    %c0_6 = arith.constant 0 : index
    %5 = vector.load %arg3[%c64, %c0_6] : memref<384x256xf32, #tpu.memory_space<vmem>>, vector<64x256xf32>
    %c128 = arith.constant 128 : index
    %c0_7 = arith.constant 0 : index
    %6 = vector.load %arg3[%c128, %c0_7] : memref<384x256xf32, #tpu.memory_space<vmem>>, vector<256x256xf32>
    %c0_8 = arith.constant 0 : index
    %c0_9 = arith.constant 0 : index
    %7 = vector.load %arg4[%c0_8, %c0_9] : memref<32x256xf32, #tpu.memory_space<vmem>>, vector<1x256xf32>
    %c8 = arith.constant 8 : index
    %c0_10 = arith.constant 0 : index
    %8 = vector.load %arg4[%c8, %c0_10] : memref<32x256xf32, #tpu.memory_space<vmem>>, vector<1x256xf32>
    %c16_11 = arith.constant 16 : index
    %c0_12 = arith.constant 0 : index
    %9 = vector.load %arg4[%c16_11, %c0_12] : memref<32x256xf32, #tpu.memory_space<vmem>>, vector<1x256xf32>
    %c24 = arith.constant 24 : index
    %c0_13 = arith.constant 0 : index
    %10 = vector.load %arg4[%c24, %c0_13] : memref<32x256xf32, #tpu.memory_space<vmem>>, vector<1x1xf32>
    %c0_14 = arith.constant 0 : index
    %c0_15 = arith.constant 0 : index
    %11 = vector.load %arg1[%c0_14, %c0_15] : memref<8x16xf32, #tpu.memory_space<vmem>>, vector<8x16xf32>
    %cst = arith.constant dense<0.000000e+00> : vector<8x64xf32>
    %12 = tpu.matmul %11, %0, %cst {dimension_numbers = #tpu.dot_dimension_numbers<[1], [0], [0], [1], [0, 0, 1, 1], [], []>} : vector<8x16xf32>, vector<16x64xf32>, vector<8x64xf32> -> vector<8x64xf32>
    %13 = vector.broadcast %2 : vector<1x64xf32> to vector<8x64xf32>
    %14 = arith.addf %12, %13 : vector<8x64xf32>
    %15 = math.tanh %14 : vector<8x64xf32>
    %cst_16 = arith.constant dense<0.000000e+00> : vector<8x64xf32>
    %16 = tpu.matmul %15, %1, %cst_16 {dimension_numbers = #tpu.dot_dimension_numbers<[1], [0], [0], [1], [0, 0, 1, 1], [], []>} : vector<8x64xf32>, vector<64x64xf32>, vector<8x64xf32> -> vector<8x64xf32>
    %17 = vector.broadcast %3 : vector<1x64xf32> to vector<8x64xf32>
    %18 = arith.addf %16, %17 : vector<8x64xf32>
    %19 = math.tanh %18 : vector<8x64xf32>
    %cst_17 = arith.constant dense<0.000000e+00> : vector<8x256xf32>
    %20 = tpu.matmul %19, %4, %cst_17 {dimension_numbers = #tpu.dot_dimension_numbers<[1], [0], [0], [1], [0, 0, 1, 1], [], []>} : vector<8x64xf32>, vector<64x256xf32>, vector<8x256xf32> -> vector<8x256xf32>
    %cst_18 = arith.constant dense<0.000000e+00> : vector<8x256xf32>
    %21 = tpu.matmul %15, %5, %cst_18 {dimension_numbers = #tpu.dot_dimension_numbers<[1], [0], [0], [1], [0, 0, 1, 1], [], []>} : vector<8x64xf32>, vector<64x256xf32>, vector<8x256xf32> -> vector<8x256xf32>
    %22 = arith.addf %20, %21 : vector<8x256xf32>
    %23 = vector.broadcast %7 : vector<1x256xf32> to vector<8x256xf32>
    %24 = arith.addf %22, %23 : vector<8x256xf32>
    %cst_19 = arith.constant 0.000000e+00 : f32
    %25 = vector.broadcast %cst_19 : f32 to vector<8x256xf32>
    %26 = arith.maximumf %24, %25 : vector<8x256xf32>
    %cst_20 = arith.constant dense<0.000000e+00> : vector<8x256xf32>
    %27 = tpu.matmul %26, %6, %cst_20 {dimension_numbers = #tpu.dot_dimension_numbers<[1], [0], [0], [1], [0, 0, 1, 1], [], []>} : vector<8x256xf32>, vector<256x256xf32>, vector<8x256xf32> -> vector<8x256xf32>
    %28 = vector.broadcast %8 : vector<1x256xf32> to vector<8x256xf32>
    %29 = arith.addf %27, %28 : vector<8x256xf32>
    %cst_21 = arith.constant 0.000000e+00 : f32
    %30 = vector.broadcast %cst_21 : f32 to vector<8x256xf32>
    %31 = arith.maximumf %29, %30 : vector<8x256xf32>
    %32 = tpu.transpose %31, [1, 0] : vector<8x256xf32> -> vector<256x8xf32>
    %cst_22 = arith.constant dense<0.000000e+00> : vector<1x8xf32>
    %33 = tpu.matmul %9, %32, %cst_22 {dimension_numbers = #tpu.dot_dimension_numbers<[1], [0], [0], [1], [0, 0, 1, 1], [], []>} : vector<1x256xf32>, vector<256x8xf32>, vector<1x8xf32> -> vector<1x8xf32>
    %34 = vector.broadcast %10 : vector<1x1xf32> to vector<1x8xf32>
    %35 = arith.addf %33, %34 : vector<1x8xf32>
    %36 = vector.shape_cast %35 : vector<1x8xf32> to vector<1x1x8xf32>
    %c0_23 = arith.constant 0 : index
    %c0_24 = arith.constant 0 : index
    %c0_25 = arith.constant 0 : index
    %37 = vector.load %arg5[%c0_23, %c0_24, %c0_25] : memref<1x1x8xf32, #tpu.memory_space<vmem>>, vector<1x1x8xf32>
    tpu.vector_store %arg5[%c0_23, %c0_24, %c0_25], %36 {strides = array<i32>} : memref<1x1x8xf32, #tpu.memory_space<vmem>>, vector<1x1x8xf32>,
    return
  }
  func.func @transform_0(%arg0: i32) -> (i32, i32) {
    %c0_i32 = arith.constant 0 : i32
    %c0_i32_0 = arith.constant 0 : i32
    return %arg0, %c0_i32 : i32, i32
  }
  func.func @transform_1(%arg0: i32) -> (i32, i32) {
    %c0_i32 = arith.constant 0 : i32
    %c0_i32_0 = arith.constant 0 : i32
    %c0_i32_1 = arith.constant 0 : i32
    return %c0_i32, %c0_i32_0 : i32, i32
  }
  func.func @transform_2(%arg0: i32) -> (i32, i32) {
    %c0_i32 = arith.constant 0 : i32
    %c0_i32_0 = arith.constant 0 : i32
    %c0_i32_1 = arith.constant 0 : i32
    return %c0_i32, %c0_i32_0 : i32, i32
  }
  func.func @transform_3(%arg0: i32) -> (i32, i32) {
    %c0_i32 = arith.constant 0 : i32
    %c0_i32_0 = arith.constant 0 : i32
    %c0_i32_1 = arith.constant 0 : i32
    return %c0_i32, %c0_i32_0 : i32, i32
  }
  func.func @transform_4(%arg0: i32) -> (i32, i32, i32) {
    %c0_i32 = arith.constant 0 : i32
    %c0_i32_0 = arith.constant 0 : i32
    %c0_i32_1 = arith.constant 0 : i32
    return %arg0, %c0_i32, %c0_i32_0 : i32, i32, i32
  }
}

</mosaic_0001>

<llo_original>
// kernel: tpu_custom_call.1
$region0: #{tpu_custom_call.1}
  #allocation0 [shape = 'u32[]', space=smem, size = 0x4, offset = 0x4, fixed_abs, tag = 'smem constant byte address 0x4 - core index']
  #allocation1 [shape = 'u32[144,128]{1,0:T(1,128)}', space=vmem, size = 0x12000, scoped, tag = 'internal scratch']
  %s0 = inlined_call_operand.vmem [shape: f32[8,16], index: 0, kind: input, shape index: {}]
  %s1 = inlined_call_operand.vmem [shape: f32[96,64], index: 1, kind: input, shape index: {}]
  %s2 = inlined_call_operand.hbm [shape: f32[384,256], index: 2, kind: input, shape index: {}]
  %s3 = inlined_call_operand.vmem [shape: f32[32,256], index: 3, kind: input, shape index: {}]
  %s4 = inlined_call_operand.hbm [shape: f32[1,1,8], index: 4, kind: output, shape index: {}]
  %s5 = sld [smem:[#allocation0]]
  $region30: #{tpu_custom_call.1} parent=0
    _
  %s7 = ssub.s32 1, %s5
  %s8 = scalar_select 0, %s7, %s5
  $region1: #{tpu_custom_call.1} parent=0
    #allocation2 [shape = 'u8[393216]{0}', space=vmem, size = 0x60000, scoped, tag = 'input window, operand 2, single buffered']
    #allocation3 [shape = 's32[1]{0}', space=sflag, size = 0x4, scoped, tag = 'scoped memory for tpu_custom_call.1']
    #allocation4 [shape = 's32[1]{0}', space=sflag, size = 0x4, scoped, tag = 'scoped memory for tpu_custom_call.1']
    #allocation5 [shape = 'u8[512]{0}', space=vmem, size = 0x400, scoped, tag = 'output window, operand 0, single buffered']
    %9 = vsyncpa [#allocation3], 0
    %10 = vsyncpa [#allocation4], 0
    // Predicated region
    $region2: #{tpu_custom_call.1} parent=1 // pred_check
      _
    $region3: #{tpu_custom_call.1} parent=1 // pred_check_branch
      %12 = sbr.rel (0) target = $region5
    $region4: #{tpu_custom_call.1} parent=1 // pred_region
      _
    $region5: #{tpu_custom_call.1} parent=1 // pred_fallthru
      _
    // Predicated region
    $region6: #{tpu_custom_call.1} parent=1 // pred_check
      _
    $region7: #{tpu_custom_call.1} parent=1 // pred_check_branch
      %14 = sbr.rel (0) target = $region9
    $region8: #{tpu_custom_call.1} parent=1 // pred_region
      _
    $region9: #{tpu_custom_call.1} parent=1 // pred_fallthru
      _
    // Predicated region
    $region10: #{tpu_custom_call.1} parent=1 // pred_check
      _
    $region11: #{tpu_custom_call.1} parent=1 // pred_check_branch
      %16 = sbr.rel (0) target = $region13
    $region12: #{tpu_custom_call.1} parent=1 // pred_region
      %s18 = ssub.s32 12288, 12288
      %19 = vsyncadd [#allocation3], %s18
      %s20 = sshll.u32 [#allocation2], 4
      %s21 = int_to_ptr.vmem [resolvable:$true] %s20
      %26 = dma.hbm_to_vmem [thread:$0]  %s2, 12288, %s21, [#allocation3], 256, 256, 16
    $region13: #{tpu_custom_call.1} parent=1 // pred_fallthru
      _
    // Predicated region
    $region14: #{tpu_custom_call.1} parent=1 // pred_check
      _
    $region15: #{tpu_custom_call.1} parent=1 // pred_check_branch
      %28 = sbr.rel (0) target = $region17
    $region16: #{tpu_custom_call.1} parent=1 // pred_region
      _
    $region17: #{tpu_custom_call.1} parent=1 // pred_fallthru
      _
    // Predicated region
    $region18: #{tpu_custom_call.1} parent=1 // pred_check
      _
    $region19: #{tpu_custom_call.1} parent=1 // pred_check_branch
      %30 = sbr.rel (0) target = $region21
    $region20: #{tpu_custom_call.1} parent=1 // pred_region
      %31 = dma.done [#allocation3], 12288
    $region21: #{tpu_custom_call.1} parent=1 // pred_fallthru
      _
    %v32 = vld [vmem:[%s1] sm:$0xff]
    %v33 = vld [vmem:[%s1 + $0x8] sm:$0xff]
    %v34 = vld [vmem:[%s1 + $0x10] sm:$0xff]
    %v35 = vld [vmem:[%s1 + $0x18] sm:$0xff]
    %v36 = vld [vmem:[%s1 + $0x20] sm:$0xff]
    %v37 = vld [vmem:[%s1 + $0x28] sm:$0xff]
    %v38 = vld [vmem:[%s1 + $0x30] sm:$0xff]
    %v39 = vld [vmem:[%s1 + $0x38] sm:$0xff]
    %v40 = vld [vmem:[%s1 + $0x40] sm:$0xff]
    %v41 = vld [vmem:[%s1 + $0x48] sm:$0xff]
    %v42 = vld [vmem:[%s1 + $0x50] sm:$0x1]
    %v43 = vld [vmem:[%s1 + $0x58] sm:$0x1]
    %v44 = vld [vmem:[#allocation2] sm:$0xff]
    %v45 = vld [vmem:[#allocation2 + $0x8] sm:$0xff]
    %v46 = vld [vmem:[#allocation2 + $0x10] sm:$0xff]
    %v47 = vld [vmem:[#allocation2 + $0x18] sm:$0xff]
    %v48 = vld [vmem:[#allocation2 + $0x20] sm:$0xff]
    %v49 = vld [vmem:[#allocation2 + $0x28] sm:$0xff]
    %v50 = vld [vmem:[#allocation2 + $0x30] sm:$0xff]
    %v51 = vld [vmem:[#allocation2 + $0x38] sm:$0xff]
    %v52 = vld [vmem:[#allocation2 + $0x40] sm:$0xff]
    %v53 = vld [vmem:[#allocation2 + $0x48] sm:$0xff]
    %v54 = vld [vmem:[#allocation2 + $0x50] sm:$0xff]
    %v55 = vld [vmem:[#allocation2 + $0x58] sm:$0xff]
    %v56 = vld [vmem:[#allocation2 + $0x60] sm:$0xff]
    %v57 = vld [vmem:[#allocation2 + $0x68] sm:$0xff]
    %v58 = vld [vmem:[#allocation2 + $0x70] sm:$0xff]
    %v59 = vld [vmem:[#allocation2 + $0x78] sm:$0xff]
    %v60 = vld [vmem:[#allocation2 + $0x80] sm:$0xff]
    %v61 = vld [vmem:[#allocation2 + $0x88] sm:$0xff]
    %v62 = vld [vmem:[#allocation2 + $0x90] sm:$0xff]
    %v63 = vld [vmem:[#allocation2 + $0x98] sm:$0xff]
    %v64 = vld [vmem:[#allocation2 + $0xa0] sm:$0xff]
    %v65 = vld [vmem:[#allocation2 + $0xa8] sm:$0xff]
    %v66 = vld [vmem:[#allocation2 + $0xb0] sm:$0xff]
    %v67 = vld [vmem:[#allocation2 + $0xb8] sm:$0xff]
    %v68 = vld [vmem:[#allocation2 + $0xc0] sm:$0xff]
    %v69 = vld [vmem:[#allocation2 + $0xc8] sm:$0xff]
    %v70 = vld [vmem:[#allocation2 + $0xd0] sm:$0xff]
    %v71 = vld [vmem:[#allocation2 + $0xd8] sm:$0xff]
    %v72 = vld [vmem:[#allocation2 + $0xe0] sm:$0xff]
    %v73 = vld [vmem:[#allocation2 + $0xe8] sm:$0xff]
    %v74 = vld [vmem:[#allocation2 + $0xf0] sm:$0xff]
    %v75 = vld [vmem:[#allocation2 + $0xf8] sm:$0xff]
    %v76 = vld [vmem:[#allocation2 + $0x100] sm:$0xff]
    %v77 = vld [vmem:[#allocation2 + $0x108] sm:$0xff]
    %v78 = vld [vmem:[#allocation2 + $0x110] sm:$0xff]
    %v79 = vld [vmem:[#allocation2 + $0x118] sm:$0xff]
    %v80 = vld [vmem:[#allocation2 + $0x120] sm:$0xff]
    %v81 = vld [vmem:[#allocation2 + $0x128] sm:$0xff]
    %v82 = vld [vmem:[#allocation2 + $0x130] sm:$0xff]
    %v83 = vld [vmem:[#allocation2 + $0x138] sm:$0xff]
    %v84 = vld [vmem:[#allocation2 + $0x140] sm:$0xff]
    %v85 = vld [vmem:[#allocation2 + $0x148] sm:$0xff]
    %v86 = vld [vmem:[#allocation2 + $0x150] sm:$0xff]
    %v87 = vld [vmem:[#allocation2 + $0x158] sm:$0xff]
    %v88 = vld [vmem:[#allocation2 + $0x160] sm:$0xff]
    %v89 = vld [vmem:[#allocation2 + $0x168] sm:$0xff]
    %v90 = vld [vmem:[#allocation2 + $0x170] sm:$0xff]
    %v91 = vld [vmem:[#allocation2 + $0x178] sm:$0xff]
    %v92 = vld [vmem:[#allocation2 + $0x180] sm:$0xff]
    %v93 = vld [vmem:[#allocation2 + $0x188] sm:$0xff]
    %v94 = vld [vmem:[#allocation2 + $0x190] sm:$0xff]
    %v95 = vld [vmem:[#allocation2 + $0x198] sm:$0xff]
    %v96 = vld [vmem:[#allocation2 + $0x1a0] sm:$0xff]
    %v97 = vld [vmem:[#allocation2 + $0x1a8] sm:$0xff]
    %v98 = vld [vmem:[#allocation2 + $0x1b0] sm:$0xff]
    %v99 = vld [vmem:[#allocation2 + $0x1b8] sm:$0xff]
    %v100 = vld [vmem:[#allocation2 + $0x1c0] sm:$0xff]
    %v101 = vld [vmem:[#allocation2 + $0x1c8] sm:$0xff]
    %v102 = vld [vmem:[#allocation2 + $0x1d0] sm:$0xff]
    %v103 = vld [vmem:[#allocation2 + $0x1d8] sm:$0xff]
    %v104 = vld [vmem:[#allocation2 + $0x1e0] sm:$0xff]
    %v105 = vld [vmem:[#allocation2 + $0x1e8] sm:$0xff]
    %v106 = vld [vmem:[#allocation2 + $0x1f0] sm:$0xff]
    %v107 = vld [vmem:[#allocation2 + $0x1f8] sm:$0xff]
    %v108 = vld [vmem:[#allocation2 + $0x200] sm:$0xff]
    %v109 = vld [vmem:[#allocation2 + $0x208] sm:$0xff]
    %v110 = vld [vmem:[#allocation2 + $0x210] sm:$0xff]
    %v111 = vld [vmem:[#allocation2 + $0x218] sm:$0xff]
    %v112 = vld [vmem:[#allocation2 + $0x220] sm:$0xff]
    %v113 = vld [vmem:[#allocation2 + $0x228] sm:$0xff]
    %v114 = vld [vmem:[#allocation2 + $0x230] sm:$0xff]
    %v115 = vld [vmem:[#allocation2 + $0x238] sm:$0xff]
    %v116 = vld [vmem:[#allocation2 + $0x240] sm:$0xff]
    %v117 = vld [vmem:[#allocation2 + $0x248] sm:$0xff]
    %v118 = vld [vmem:[#allocation2 + $0x250] sm:$0xff]
    %v119 = vld [vmem:[#allocation2 + $0x258] sm:$0xff]
    %v120 = vld [vmem:[#allocation2 + $0x260] sm:$0xff]
    %v121 = vld [vmem:[#allocation2 + $0x268] sm:$0xff]
    %v122 = vld [vmem:[#allocation2 + $0x270] sm:$0xff]
    %v123 = vld [vmem:[#allocation2 + $0x278] sm:$0xff]
    %v124 = vld [vmem:[#allocation2 + $0x280] sm:$0xff]
    %v125 = vld [vmem:[#allocation2 + $0x288] sm:$0xff]
    %v126 = vld [vmem:[#allocation2 + $0x290] sm:$0xff]
    %v127 = vld [vmem:[#allocation2 + $0x298] sm:$0xff]
    %v128 = vld [vmem:[#allocation2 + $0x2a0] sm:$0xff]
    %v129 = vld [vmem:[#allocation2 + $0x2a8] sm:$0xff]
    %v130 = vld [vmem:[#allocation2 + $0x2b0] sm:$0xff]
    %v131 = vld [vmem:[#allocation2 + $0x2b8] sm:$0xff]
    %v132 = vld [vmem:[#allocation2 + $0x2c0] sm:$0xff]
    %v133 = vld [vmem:[#allocation2 + $0x2c8] sm:$0xff]
    %v134 = vld [vmem:[#allocation2 + $0x2d0] sm:$0xff]
    %v135 = vld [vmem:[#allocation2 + $0x2d8] sm:$0xff]
    %v136 = vld [vmem:[#allocation2 + $0x2e0] sm:$0xff]
    %v137 = vld [vmem:[#allocation2 + $0x2e8] sm:$0xff]
    %v138 = vld [vmem:[#allocation2 + $0x2f0] sm:$0xff]
    %v139 = vld [vmem:[#allocation2 + $0x2f8] sm:$0xff]
    %v140 = vld [vmem:[%s3] ss:$8 sm:$0x3]
    %s141 = scalar_lea.vmem %s3, 16
    %v142 = vld [vmem:[%s141] ss:$8 sm:$0x3]
    %s143 = scalar_lea.vmem %s3, 32
    %v144 = vld [vmem:[%s143] ss:$8 sm:$0x3]
    %v145 = vld [vmem:[%s3 + $0x30] ss:$0 sm:$0xff]
    %v146 = vld [vmem:[%s0] sm:$0xff]
    %v147 = vlaneseq
    %v148 = vshrl.u32 %v147, 7
    %v149 = vsub.s32 0, %v148
    %v150 = vrot.slane %v42, %v149
    %vm151 = vcmask 130048
    %v153 = vsel %vm151, %v146, 0
    %155 = vmatprep.subr.mxu0 0.0
    %156 = vmatpush1.msra.mxu0 0.0
    %157 = vmatprep.subr.mxu0 0.0
    %158 = vmatpush1.msra.mxu0 0.0
    %159 = vmatprep.subr.mxu0 0.0
    %160 = vmatpush1.msra.mxu0 0.0
    %161 = vmatprep.subr.mxu0 0.0
    %162 = vmatpush1.msra.mxu0 0.0
    %163 = vmatprep.subr.mxu0 0.0
    %164 = vmatpush1.msra.mxu0 0.0
    %165 = vmatprep.subr.mxu0 0.0
    %166 = vmatpush1.msra.mxu0 0.0
    %167 = vmatprep.subr.mxu0 0.0
    %168 = vmatpush1.msra.mxu0 0.0
    %169 = vmatprep.subr.mxu0 0.0
    %170 = vmatpush1.msra.mxu0 0.0
    %171 = vmatprep.subr.mxu0 0.0
    %172 = vmatpush1.msra.mxu0 0.0
    %173 = vmatprep.subr.mxu0 0.0
    %174 = vmatpush1.msra.mxu0 0.0
    %175 = vmatprep.subr.mxu0 0.0
    %176 = vmatpush1.msra.mxu0 0.0
    %177 = vmatprep.subr.mxu0 0.0
    %178 = vmatpush1.msra.mxu0 0.0
    %179 = vmatprep.subr.mxu0 0.0
    %180 = vmatpush1.msra.mxu0 0.0
    %181 = vmatprep.subr.mxu0 0.0
    %182 = vmatpush1.msra.mxu0 0.0
    %183 = vmatprep.subr.mxu0 0.0
    %184 = vmatpush1.msra.mxu0 %v33
    %185 = vmatprep.subr.mxu0 0.0
    %186 = vmatpush1.msra.mxu0 %v32
    %187 = vmatprep.subr.mxu0 0.0
    %188 = vmatpush2.msra.mxu0 0.0
    %189 = vmatprep.subr.mxu0 0.0
    %190 = vmatpush2.msra.mxu0 0.0
    %191 = vmatprep.subr.mxu0 0.0
    %192 = vmatpush2.msra.mxu0 0.0
    %193 = vmatprep.subr.mxu0 0.0
    %194 = vmatpush2.msra.mxu0 0.0
    %195 = vmatprep.subr.mxu0 0.0
    %196 = vmatpush2.msra.mxu0 0.0
    %197 = vmatprep.subr.mxu0 0.0
    %198 = vmatpush2.msra.mxu0 0.0
    %199 = vmatprep.subr.mxu0 0.0
    %200 = vmatpush2.msra.mxu0 0.0
    %201 = vmatprep.subr.mxu0 0.0
    %202 = vmatpush2.msra.mxu0 0.0
    %203 = vmatprep.subr.mxu0 0.0
    %204 = vmatpush2.msra.mxu0 0.0
    %205 = vmatprep.subr.mxu0 0.0
    %206 = vmatpush2.msra.mxu0 0.0
    %207 = vmatprep.subr.mxu0 0.0
    %208 = vmatpush2.msra.mxu0 0.0
    %209 = vmatprep.subr.mxu0 0.0
    %210 = vmatpush2.msra.mxu0 0.0
    %211 = vmatprep.subr.mxu0 0.0
    %212 = vmatpush2.msra.mxu0 0.0
    %213 = vmatprep.subr.mxu0 0.0
    %214 = vmatpush2.msra.mxu0 0.0
    %215 = vmatprep.subr.mxu0 0.0
    %216 = vmatpush2.msra.mxu0 0.0
    %217 = vmatprep.subr.mxu0 0.0
    %218 = vmatpush2.msra.mxu0 0.0
    %219 = vmatprep.mubr.f32.mxu0 0.0
    %220 = vmatmul.mubr.f32.gmra.mxu0 %v153
    %v221 = vpop.f32.mrf.mxu0
    %v222 = vadd.f32 %v150, %v221
    %v223 = vpop.f32.mrf.mxu0
    %224 = vdwg.mxu0
    %v225 = vtanh.pop %v222
    %v226 = vlaneseq
    %v227 = vshrl.u32 %v226, 7
    %v228 = vsub.s32 0, %v227
    %v229 = vrot.slane %v43, %v228
    %vm230 = vcmask 523264
    %v232 = vsel %vm230, %v225, 0
    %234 = vmatprep.subr.mxu0 0.0
    %235 = vmatpush1.msra.mxu0 0.0
    %236 = vmatprep.subr.mxu0 0.0
    %237 = vmatpush1.msra.mxu0 0.0
    %238 = vmatprep.subr.mxu0 0.0
    %239 = vmatpush1.msra.mxu0 0.0
    %240 = vmatprep.subr.mxu0 0.0
    %241 = vmatpush1.msra.mxu0 0.0
    %242 = vmatprep.subr.mxu0 0.0
    %243 = vmatpush1.msra.mxu0 0.0
    %244 = vmatprep.subr.mxu0 0.0
    %245 = vmatpush1.msra.mxu0 0.0
    %246 = vmatprep.subr.mxu0 0.0
    %247 = vmatpush1.msra.mxu0 0.0
    %248 = vmatprep.subr.mxu0 0.0
    %249 = vmatpush1.msra.mxu0 0.0
    %250 = vmatprep.subr.mxu0 0.0
    %251 = vmatpush1.msra.mxu0 %v41
    %252 = vmatprep.subr.mxu0 0.0
    %253 = vmatpush1.msra.mxu0 %v40
    %254 = vmatprep.subr.mxu0 0.0
    %255 = vmatpush1.msra.mxu0 %v39
    %256 = vmatprep.subr.mxu0 0.0
    %257 = vmatpush1.msra.mxu0 %v38
    %258 = vmatprep.subr.mxu0 0.0
    %259 = vmatpush1.msra.mxu0 %v37
    %260 = vmatprep.subr.mxu0 0.0
    %261 = vmatpush1.msra.mxu0 %v36
    %262 = vmatprep.subr.mxu0 0.0
    %263 = vmatpush1.msra.mxu0 %v35
    %264 = vmatprep.subr.mxu0 0.0
    %265 = vmatpush1.msra.mxu0 %v34
    %266 = vmatprep.subr.mxu0 0.0
    %267 = vmatpush2.msra.mxu0 0.0
    %268 = vmatprep.subr.mxu0 0.0
    %269 = vmatpush2.msra.mxu0 0.0
    %270 = vmatprep.subr.mxu0 0.0
    %271 = vmatpush2.msra.mxu0 0.0
    %272 = vmatprep.subr.mxu0 0.0
    %273 = vmatpush2.msra.mxu0 0.0
    %274 = vmatprep.subr.mxu0 0.0
    %275 = vmatpush2.msra.mxu0 0.0
    %276 = vmatprep.subr.mxu0 0.0
    %277 = vmatpush2.msra.mxu0 0.0
    %278 = vmatprep.subr.mxu0 0.0
    %279 = vmatpush2.msra.mxu0 0.0
    %280 = vmatprep.subr.mxu0 0.0
    %281 = vmatpush2.msra.mxu0 0.0
    %282 = vmatprep.subr.mxu0 0.0
    %283 = vmatpush2.msra.mxu0 0.0
    %284 = vmatprep.subr.mxu0 0.0
    %285 = vmatpush2.msra.mxu0 0.0
    %286 = vmatprep.subr.mxu0 0.0
    %287 = vmatpush2.msra.mxu0 0.0
    %288 = vmatprep.subr.mxu0 0.0
    %289 = vmatpush2.msra.mxu0 0.0
    %290 = vmatprep.subr.mxu0 0.0
    %291 = vmatpush2.msra.mxu0 0.0
    %292 = vmatprep.subr.mxu0 0.0
    %293 = vmatpush2.msra.mxu0 0.0
    %294 = vmatprep.subr.mxu0 0.0
    %295 = vmatpush2.msra.mxu0 0.0
    %296 = vmatprep.subr.mxu0 0.0
    %297 = vmatpush2.msra.mxu0 0.0
    %298 = vmatprep.mubr.f32.mxu0 0.0
    %299 = vmatmul.mubr.f32.gmra.mxu0 %v232
    %v300 = vpop.f32.mrf.mxu0
    %v301 = vadd.f32 %v229, %v300
    %v302 = vpop.f32.mrf.mxu0
    %303 = vdwg.mxu0
    %v304 = vtanh.pop %v301
    %305 = vmatprep.subr.mxu0 0.0
    %306 = vmatpush1.msra.mxu0 0.0
    %307 = vmatprep.subr.mxu0 0.0
    %308 = vmatpush1.msra.mxu0 0.0
    %309 = vmatprep.subr.mxu0 0.0
    %310 = vmatpush1.msra.mxu0 0.0
    %311 = vmatprep.subr.mxu0 0.0
    %312 = vmatpush1.msra.mxu0 0.0
    %313 = vmatprep.subr.mxu0 0.0
    %314 = vmatpush1.msra.mxu0 0.0
    %315 = vmatprep.subr.mxu0 0.0
    %316 = vmatpush1.msra.mxu0 0.0
    %317 = vmatprep.subr.mxu0 0.0
    %318 = vmatpush1.msra.mxu0 0.0
    %319 = vmatprep.subr.mxu0 0.0
    %320 = vmatpush1.msra.mxu0 0.0
    %321 = vmatprep.subr.mxu0 %v75
    %322 = vmatpush1.msra.mxu0 %v74
    %323 = vmatprep.subr.mxu0 %v73
    %324 = vmatpush1.msra.mxu0 %v72
    %325 = vmatprep.subr.mxu0 %v71
    %326 = vmatpush1.msra.mxu0 %v70
    %327 = vmatprep.subr.mxu0 %v69
    %328 = vmatpush1.msra.mxu0 %v68
    %329 = vmatprep.subr.mxu0 %v67
    %330 = vmatpush1.msra.mxu0 %v66
    %331 = vmatprep.subr.mxu0 %v65
    %332 = vmatpush1.msra.mxu0 %v64
    %333 = vmatprep.subr.mxu0 %v63
    %334 = vmatpush1.msra.mxu0 %v62
    %335 = vmatprep.subr.mxu0 %v61
    %336 = vmatpush1.msra.mxu0 %v60
    %337 = vmatprep.subr.mxu0 0.0
    %338 = vmatpush2.msra.mxu0 0.0
    %339 = vmatprep.subr.mxu0 0.0
    %340 = vmatpush2.msra.mxu0 0.0
    %341 = vmatprep.subr.mxu0 0.0
    %342 = vmatpush2.msra.mxu0 0.0
    %343 = vmatprep.subr.mxu0 0.0
    %344 = vmatpush2.msra.mxu0 0.0
    %345 = vmatprep.subr.mxu0 0.0
    %346 = vmatpush2.msra.mxu0 0.0
    %347 = vmatprep.subr.mxu0 0.0
    %348 = vmatpush2.msra.mxu0 0.0
    %349 = vmatprep.subr.mxu0 0.0
    %350 = vmatpush2.msra.mxu0 0.0
    %351 = vmatprep.subr.mxu0 0.0
    %352 = vmatpush2.msra.mxu0 0.0
    %353 = vmatprep.subr.mxu0 0.0
    %354 = vmatpush2.msra.mxu0 0.0
    %355 = vmatprep.subr.mxu0 0.0
    %356 = vmatpush2.msra.mxu0 0.0
    %357 = vmatprep.subr.mxu0 0.0
    %358 = vmatpush2.msra.mxu0 0.0
    %359 = vmatprep.subr.mxu0 0.0
    %360 = vmatpush2.msra.mxu0 0.0
    %361 = vmatprep.subr.mxu0 0.0
    %362 = vmatpush2.msra.mxu0 0.0
    %363 = vmatprep.subr.mxu0 0.0
    %364 = vmatpush2.msra.mxu0 0.0
    %365 = vmatprep.subr.mxu0 0.0
    %366 = vmatpush2.msra.mxu0 0.0
    %367 = vmatprep.subr.mxu0 0.0
    %368 = vmatpush2.msra.mxu0 0.0
    %369 = vmatprep.mubr.f32.mxu0 0.0
    %370 = vmatmul.mubr.f32.gmra.mxu0 %v232
    %v371 = vpop.f32.mrf.mxu0
    %v372 = vadd.f32 0.0, %v371
    %v373 = vpop.f32.mrf.mxu0
    %v374 = vadd.f32 0.0, %v373
    %375 = vdwg.mxu0
    %v377 = vsel %vm230, %v304, 0
    %379 = vmatprep.subr.mxu0 0.0
    %380 = vmatpush1.msra.mxu0 0.0
    %381 = vmatprep.subr.mxu0 0.0
    %382 = vmatpush1.msra.mxu0 0.0
    %383 = vmatprep.subr.mxu0 0.0
    %384 = vmatpush1.msra.mxu0 0.0
    %385 = vmatprep.subr.mxu0 0.0
    %386 = vmatpush1.msra.mxu0 0.0
    %387 = vmatprep.subr.mxu0 0.0
    %388 = vmatpush1.msra.mxu0 0.0
    %389 = vmatprep.subr.mxu0 0.0
    %390 = vmatpush1.msra.mxu0 0.0
    %391 = vmatprep.subr.mxu0 0.0
    %392 = vmatpush1.msra.mxu0 0.0
    %393 = vmatprep.subr.mxu0 0.0
    %394 = vmatpush1.msra.mxu0 0.0
    %395 = vmatprep.subr.mxu0 %v59
    %396 = vmatpush1.msra.mxu0 %v58
    %397 = vmatprep.subr.mxu0 %v57
    %398 = vmatpush1.msra.mxu0 %v56
    %399 = vmatprep.subr.mxu0 %v55
    %400 = vmatpush1.msra.mxu0 %v54
    %401 = vmatprep.subr.mxu0 %v53
    %402 = vmatpush1.msra.mxu0 %v52
    %403 = vmatprep.subr.mxu0 %v51
    %404 = vmatpush1.msra.mxu0 %v50
    %405 = vmatprep.subr.mxu0 %v49
    %406 = vmatpush1.msra.mxu0 %v48
    %407 = vmatprep.subr.mxu0 %v47
    %408 = vmatpush1.msra.mxu0 %v46
    %409 = vmatprep.subr.mxu0 %v45
    %410 = vmatpush1.msra.mxu0 %v44
    %411 = vmatprep.subr.mxu0 0.0
    %412 = vmatpush2.msra.mxu0 0.0
    %413 = vmatprep.subr.mxu0 0.0
    %414 = vmatpush2.msra.mxu0 0.0
    %415 = vmatprep.subr.mxu0 0.0
    %416 = vmatpush2.msra.mxu0 0.0
    %417 = vmatprep.subr.mxu0 0.0
    %418 = vmatpush2.msra.mxu0 0.0
    %419 = vmatprep.subr.mxu0 0.0
    %420 = vmatpush2.msra.mxu0 0.0
    %421 = vmatprep.subr.mxu0 0.0
    %422 = vmatpush2.msra.mxu0 0.0
    %423 = vmatprep.subr.mxu0 0.0
    %424 = vmatpush2.msra.mxu0 0.0
    %425 = vmatprep.subr.mxu0 0.0
    %426 = vmatpush2.msra.mxu0 0.0
    %427 = vmatprep.subr.mxu0 0.0
    %428 = vmatpush2.msra.mxu0 0.0
    %429 = vmatprep.subr.mxu0 0.0
    %430 = vmatpush2.msra.mxu0 0.0
    %431 = vmatprep.subr.mxu0 0.0
    %432 = vmatpush2.msra.mxu0 0.0
    %433 = vmatprep.subr.mxu0 0.0
    %434 = vmatpush2.msra.mxu0 0.0
    %435 = vmatprep.subr.mxu0 0.0
    %436 = vmatpush2.msra.mxu0 0.0
    %437 = vmatprep.subr.mxu0 0.0
    %438 = vmatpush2.msra.mxu0 0.0
    %439 = vmatprep.subr.mxu0 0.0
    %440 = vmatpush2.msra.mxu0 0.0
    %441 = vmatprep.subr.mxu0 0.0
    %442 = vmatpush2.msra.mxu0 0.0
    %443 = vmatprep.mubr.f32.mxu0 0.0
    %444 = vmatmul.mubr.f32.gmra.mxu0 %v377
    %v445 = vpop.f32.mrf.mxu0
    %v446 = vadd.f32 %v372, %v445
    %v447 = vpop.f32.mrf.mxu0
    %v448 = vadd.f32 %v374, %v447
    %449 = vdwg.mxu0
    %v451 = vlaneseq
    %v452 = vshrl.u32 %v451, 7
    %v453 = vsub.s32 0, %v452
    %v454 = vrot.slane %v140, %v453
    %v455 = vlaneseq
    %v456 = vshrl.u32 %v455, 7
    %v457 = vsub.s32 1, %v456
    %v458 = vrot.slane %v140, %v457
    %v461 = vadd.f32 %v446, %v454
    %v462 = vadd.f32 %v448, %v458
    %v463 = vmax.f32 %v461, 0.0
    %v464 = vmax.f32 %v462, 0.0
    %v466 = vlaneseq
    %v467 = vshrl.u32 %v466, 7
    %v468 = vsub.s32 0, %v467
    %v469 = vrot.slane %v142, %v468
    %v470 = vlaneseq
    %v471 = vshrl.u32 %v470, 7
    %v472 = vsub.s32 1, %v471
    %v473 = vrot.slane %v142, %v472
    %476 = vmatprep.subr.mxu0 %v107
    %477 = vmatpush1.msra.mxu0 %v106
    %478 = vmatprep.subr.mxu0 %v105
    %479 = vmatpush1.msra.mxu0 %v104
    %480 = vmatprep.subr.mxu0 %v103
    %481 = vmatpush1.msra.mxu0 %v102
    %482 = vmatprep.subr.mxu0 %v101
    %483 = vmatpush1.msra.mxu0 %v100
    %484 = vmatprep.subr.mxu0 %v99
    %485 = vmatpush1.msra.mxu0 %v98
    %486 = vmatprep.subr.mxu0 %v97
    %487 = vmatpush1.msra.mxu0 %v96
    %488 = vmatprep.subr.mxu0 %v95
    %489 = vmatpush1.msra.mxu0 %v94
    %490 = vmatprep.subr.mxu0 %v93
    %491 = vmatpush1.msra.mxu0 %v92
    %492 = vmatprep.subr.mxu0 %v91
    %493 = vmatpush1.msra.mxu0 %v90
    %494 = vmatprep.subr.mxu0 %v89
    %495 = vmatpush1.msra.mxu0 %v88
    %496 = vmatprep.subr.mxu0 %v87
    %497 = vmatpush1.msra.mxu0 %v86
    %498 = vmatprep.subr.mxu0 %v85
    %499 = vmatpush1.msra.mxu0 %v84
    %500 = vmatprep.subr.mxu0 %v83
    %501 = vmatpush1.msra.mxu0 %v82
    %502 = vmatprep.subr.mxu0 %v81
    %503 = vmatpush1.msra.mxu0 %v80
    %504 = vmatprep.subr.mxu0 %v79
    %505 = vmatpush1.msra.mxu0 %v78
    %506 = vmatprep.subr.mxu0 %v77
    %507 = vmatpush1.msra.mxu0 %v76
    %508 = vmatprep.subr.mxu0 %v139
    %509 = vmatpush2.msra.mxu0 %v138
    %510 = vmatprep.subr.mxu0 %v137
    %511 = vmatpush2.msra.mxu0 %v136
    %512 = vmatprep.subr.mxu0 %v135
    %513 = vmatpush2.msra.mxu0 %v134
    %514 = vmatprep.subr.mxu0 %v133
    %515 = vmatpush2.msra.mxu0 %v132
    %516 = vmatprep.subr.mxu0 %v131
    %517 = vmatpush2.msra.mxu0 %v130
    %518 = vmatprep.subr.mxu0 %v129
    %519 = vmatpush2.msra.mxu0 %v128
    %520 = vmatprep.subr.mxu0 %v127
    %521 = vmatpush2.msra.mxu0 %v126
    %522 = vmatprep.subr.mxu0 %v125
    %523 = vmatpush2.msra.mxu0 %v124
    %524 = vmatprep.subr.mxu0 %v123
    %525 = vmatpush2.msra.mxu0 %v122
    %526 = vmatprep.subr.mxu0 %v121
    %527 = vmatpush2.msra.mxu0 %v120
    %528 = vmatprep.subr.mxu0 %v119
    %529 = vmatpush2.msra.mxu0 %v118
    %530 = vmatprep.subr.mxu0 %v117
    %531 = vmatpush2.msra.mxu0 %v116
    %532 = vmatprep.subr.mxu0 %v115
    %533 = vmatpush2.msra.mxu0 %v114
    %534 = vmatprep.subr.mxu0 %v113
    %535 = vmatpush2.msra.mxu0 %v112
    %536 = vmatprep.subr.mxu0 %v111
    %537 = vmatpush2.msra.mxu0 %v110
    %538 = vmatprep.subr.mxu0 %v109
    %539 = vmatpush2.msra.mxu0 %v108
    %540 = vmatprep.mubr.f32.mxu0 %v464
    %541 = vmatmul.mubr.f32.gmra.mxu0 %v463
    %v542 = vpop.f32.mrf.mxu0
    %v543 = vadd.f32 %v469, %v542
    %v544 = vpop.f32.mrf.mxu0
    %v545 = vadd.f32 %v473, %v544
    %546 = vdwg.mxu0
    %v547 = vmax.f32 %v543, 0.0
    %v548 = vmax.f32 %v545, 0.0
    %550 = vset.pattern.permute.xlu0 0
    %551 = vperm.xlu0 %550, %v145
    %v552 = vpop.permute.xlu0 %551
    %v555 = vlaneseq
    %v556 = vshrl.u32 %v555, 7
    %v557 = vsub.s32 0, %v556
    %v558 = vrot.slane %v144, %v557
    %v559 = vlaneseq
    %v560 = vshrl.u32 %v559, 7
    %v561 = vsub.s32 1, %v560
    %v562 = vrot.slane %v144, %v561
    %565 = vmatprep.subr.mxu0 0.0
    %566 = vmatpush1.xpose.msra.mxu0 0.0
    %567 = vmatprep.subr.mxu0 0.0
    %568 = vmatpush1.xpose.msra.mxu0 0.0
    %569 = vmatprep.subr.mxu0 0.0
    %570 = vmatpush1.xpose.msra.mxu0 0.0
    %571 = vmatprep.subr.mxu0 0.0
    %572 = vmatpush1.xpose.msra.mxu0 0.0
    %573 = vmatprep.subr.mxu0 0.0
    %574 = vmatpush1.xpose.msra.mxu0 0.0
    %575 = vmatprep.subr.mxu0 0.0
    %576 = vmatpush1.xpose.msra.mxu0 0.0
    %577 = vmatprep.subr.mxu0 0.0
    %578 = vmatpush1.xpose.msra.mxu0 0.0
    %579 = vmatprep.subr.mxu0 0.0
    %580 = vmatpush1.xpose.msra.mxu0 0.0
    %581 = vmatprep.subr.mxu0 0.0
    %582 = vmatpush1.xpose.msra.mxu0 0.0
    %583 = vmatprep.subr.mxu0 0.0
    %584 = vmatpush1.xpose.msra.mxu0 0.0
    %585 = vmatprep.subr.mxu0 0.0
    %586 = vmatpush1.xpose.msra.mxu0 0.0
    %587 = vmatprep.subr.mxu0 0.0
    %588 = vmatpush1.xpose.msra.mxu0 0.0
    %589 = vmatprep.subr.mxu0 0.0
    %590 = vmatpush1.xpose.msra.mxu0 0.0
    %591 = vmatprep.subr.mxu0 0.0
    %592 = vmatpush1.xpose.msra.mxu0 0.0
    %593 = vmatprep.subr.mxu0 0.0
    %594 = vmatpush1.xpose.msra.mxu0 0.0
    %595 = vmatprep.subr.mxu0 %v548
    %596 = vmatpush1.xpose.msra.mxu0 %v547
    %597 = vmatprep.subr.mxu0 0.0
    %598 = vmatpush2.xpose.msra.mxu0 0.0
    %599 = vmatprep.subr.mxu0 0.0
    %600 = vmatpush2.xpose.msra.mxu0 0.0
    %601 = vmatprep.subr.mxu0 0.0
    %602 = vmatpush2.xpose.msra.mxu0 0.0
    %603 = vmatprep.subr.mxu0 0.0
    %604 = vmatpush2.xpose.msra.mxu0 0.0
    %605 = vmatprep.subr.mxu0 0.0
    %606 = vmatpush2.xpose.msra.mxu0 0.0
    %607 = vmatprep.subr.mxu0 0.0
    %608 = vmatpush2.xpose.msra.mxu0 0.0
    %609 = vmatprep.subr.mxu0 0.0
    %610 = vmatpush2.xpose.msra.mxu0 0.0
    %611 = vmatprep.subr.mxu0 0.0
    %612 = vmatpush2.xpose.msra.mxu0 0.0
    %613 = vmatprep.subr.mxu0 0.0
    %614 = vmatpush2.xpose.msra.mxu0 0.0
    %615 = vmatprep.subr.mxu0 0.0
    %616 = vmatpush2.xpose.msra.mxu0 0.0
    %617 = vmatprep.subr.mxu0 0.0
    %618 = vmatpush2.xpose.msra.mxu0 0.0
    %619 = vmatprep.subr.mxu0 0.0
    %620 = vmatpush2.xpose.msra.mxu0 0.0
    %621 = vmatprep.subr.mxu0 0.0
    %622 = vmatpush2.xpose.msra.mxu0 0.0
    %623 = vmatprep.subr.mxu0 0.0
    %624 = vmatpush2.xpose.msra.mxu0 0.0
    %625 = vmatprep.subr.mxu0 0.0
    %626 = vmatpush2.xpose.msra.mxu0 0.0
    %627 = vmatprep.subr.mxu0 0.0
    %628 = vmatpush2.xpose.msra.mxu0 0.0
    %629 = vmatprep.mubr.f32.mxu0 %v562
    %630 = vmatmul.mubr.f32.gmra.mxu0 %v558
    %v631 = vpop.f32.mrf.mxu0
    %v632 = vadd.f32 %v552, %v631
    %v633 = vpop.f32.mrf.mxu0
    %634 = vdwg.mxu0
    %vm635 = vcmask 57344
    %636 = vst.msk [vmem:[#allocation5] sm:$0x1] %vm635, %v632
    // Predicated region
    $region22: #{tpu_custom_call.1} parent=1 // pred_check
      _
    $region23: #{tpu_custom_call.1} parent=1 // pred_check_branch
      %638 = sbr.rel (0) target = $region25
    $region24: #{tpu_custom_call.1} parent=1 // pred_region
      %s640 = ssub.s32 16, 16
      %641 = vsyncadd [#allocation4], %s640
      %s643 = sshll.u32 [#allocation5], 4
      %s644 = int_to_ptr.vmem [resolvable:$true] %s643
      %646 = dma.vmem_to_hbm [thread:$0]  %s644, 16, %s4, [#allocation4]
    $region25: #{tpu_custom_call.1} parent=1 // pred_fallthru
      _
    // Predicated region
    $region26: #{tpu_custom_call.1} parent=1 // pred_check
      _
    $region27: #{tpu_custom_call.1} parent=1 // pred_check_branch
      %648 = sbr.rel (0) target = $region29
    $region28: #{tpu_custom_call.1} parent=1 // pred_region
      %649 = dma.done [#allocation4], 16
    $region29: #{tpu_custom_call.1} parent=1 // pred_fallthru
      _
    %650 = vsyncpa [#allocation3], 1
    %651 = vsyncpa [#allocation4], 1

</llo_original>
